<compile_context>
chip_gen: v7x
topology: tpu7x:2x2x1
jax: 0.10.0
libtpu: 0.0.40
codegen_flags: <defaults>
</compile_context>

<pallas_src>
import math

import jax
import jax.numpy as jnp
import numpy as np
from jax.experimental import pallas as pl
from jax.experimental.pallas import tpu as pltpu

L = 16            # hypercube last-dim length == input length of the Fourier layer
F = L // 2 + 1    # number of rfft bins (9)
LANE = 128        # TPU lane width; fused output is padded to a multiple of this


# ---------------------------------------------------------------------------
# Pallas kernel: one fused, folded matmul for ALL heads
# ---------------------------------------------------------------------------
def _fused_kernel(x_ref, w_ref, o_ref):
    # (N, 16) @ (16, TILE_M) -> (N, TILE_M); single MXU push, lane-dense store.
    o_ref[...] = jnp.dot(x_ref[...], w_ref[...],
                         preferred_element_type=jnp.float32)


def _run_fused(x, w_fused, tile_m=LANE):
    n, l = x.shape
    _, m_pad = w_fused.shape
    assert m_pad % tile_m == 0
    grid = (m_pad // tile_m,)
    return pl.pallas_call(
        _fused_kernel,
        out_shape=jax.ShapeDtypeStruct((n, m_pad), jnp.float32),
        grid=grid,
        in_specs=[
            pl.BlockSpec((n, l), lambda j: (0, 0)),        # hyper slices (tiny, re-used)
            pl.BlockSpec((l, tile_m), lambda j: (0, j)),   # folded fused weights
        ],
        out_specs=pl.BlockSpec((n, tile_m), lambda j: (0, j)),
        compiler_params=pltpu.CompilerParams(
            dimension_semantics=("parallel",)),
    )(x, w_fused)


# ---------------------------------------------------------------------------
# Real DFT matrices (float64 numpy; same convention as torch.fft.rfft / irfft)
# ---------------------------------------------------------------------------
def _dft_matrices_np():
    n = np.arange(L, dtype=np.float64)[:, None]              # (L, 1)
    k = np.arange(F, dtype=np.float64)[None, :]               # (1, F)
    ang = 2.0 * np.pi * n * k / L
    fr = np.cos(ang)                                          # (L, F)
    fi = -np.sin(ang)                                         # (L, F)

    kk = np.arange(F, dtype=np.float64)[:, None]              # (F, 1)
    m = np.arange(L, dtype=np.float64)[None, :]               # (1, L)
    ang2 = 2.0 * np.pi * kk * m / L
    scale = np.where((kk == 0) | (kk == L // 2), 1.0, 2.0) / L
    cr = scale * np.cos(ang2)                                 # (F, L)
    ci = -scale * np.sin(ang2)                                # (F, L) (DC/Nyquist rows 0)
    return fr, fi, cr, ci


# ---------------------------------------------------------------------------
# HyperDimensionalAdapter (parameters + forward wrapper)
# ---------------------------------------------------------------------------
class HyperDimensionalAdapter:
    def __init__(self, output_shapes, num_context_rows, key):
        self.output_shapes = dict(output_shapes)
        self.num_context_rows = num_context_rows
        k_cube, k_heads = jax.random.split(key)
        # nn.Parameter(torch.randn(16, 16, 16, 16))
        self.hypercube = jax.random.normal(k_cube, (16, 16, 16, 16), jnp.float32)

        fr, fi, cr, ci = _dft_matrices_np()

        self.heads = {}       # raw params (for the jnp.fft reference)
        self.segments = {}    # name -> (column offset, width) in the fused output
        folded_blocks = []
        offset = 0
        head_keys = jax.random.split(k_heads, len(self.output_shapes))
        for hk, (name, shape) in zip(head_keys, self.output_shapes.items()):
            total = int(np.prod(shape))
            assert total % num_context_rows == 0, "prod(shape) must be divisible by N"
            m = total // num_context_rows
            k1, k2, k3 = jax.random.split(hk, 3)
            freq_weights = jax.random.normal(k1, (F,), jnp.float32)
            phase_shift = jax.random.normal(k2, (F,), jnp.float32)
            proj = jax.random.normal(k3, (L, m), jnp.float32) / math.sqrt(L)
            self.heads[name] = {"wr": freq_weights, "wi": phase_shift, "proj": proj}

            # Algebraic fold:  irfft(rfft(x) * (wr + i*wi)) @ proj  ==  x @ W_head
            #   xr = x@Fr, xi = x@Fi
            #   yr = xr*wr - xi*wi ; yi = xr*wi + xi*wr
            #   y  = yr@Cr + yi@Ci
            # => A = (Fr*wr - Fi*wi)@Cr + (Fr*wi + Fi*wr)@Ci ;  W_head = A @ proj
            wr = np.asarray(freq_weights, np.float64)[None, :]   # (1, F)
            wi = np.asarray(phase_shift, np.float64)[None, :]    # (1, F)
            A = (fr * wr - fi * wi) @ cr + (fr * wi + fi * wr) @ ci   # (L, L)
            W_head = A @ np.asarray(proj, np.float64)                 # (L, M)
            folded_blocks.append(W_head)
            self.segments[name] = (offset, m)
            offset += m

        total_m = offset
        # Zero-pad the fused weight so the kernel output is lane-dense (mult of 128).
        m_pad = max(LANE, ((total_m + LANE - 1) // LANE) * LANE)
        w = np.zeros((L, m_pad), np.float64)
        w[:, :total_m] = np.concatenate(folded_blocks, axis=1)
        self.w_fused = jnp.asarray(w, jnp.float32)               # (16, m_pad)

    def gather_slices(self, context):
        # slice_indices = (context * 15).long()  (truncation toward zero)
        idx = (context * 15.0).astype(jnp.int32)
        return self.hypercube[idx[:, 0], idx[:, 1], idx[:, 2], :]    # (N, 16)

    def __call__(self, context):
        hyper_slices = self.gather_slices(context)                   # (N, 16)
        fused = _run_fused(hyper_slices, self.w_fused)               # (N, m_pad)
        out = {}
        for name, shape in self.output_shapes.items():
            off, m = self.segments[name]
            out[name] = fused[:, off:off + m].reshape(shape)
        return out

    # pure-JAX reference (jnp.fft) for sanity checking the folded kernel math
    def reference(self, context):
        hyper_slices = self.gather_slices(context)
        out = {}
        for name, shape in self.output_shapes.items():
            p = self.heads[name]
            xf = jnp.fft.rfft(hyper_slices, axis=-1)
            mod = xf * (p["wr"] + 1j * p["wi"])
            y = jnp.fft.irfft(mod, n=L, axis=-1)
            out[name] = (y @ p["proj"]).reshape(shape)
        return out


# ---------------------------------------------------------------------------
if __name__ == "__main__":
    key = jax.random.PRNGKey(0)
    k_ctx, k_params = jax.random.split(key)

    N = 8                                   # number of context rows
    context = jax.random.uniform(k_ctx, (N, 3), jnp.float32)     # values in [0, 1)

    output_shapes = {"gamma": (8, 32), "beta": (4, 2, 16)}       # prods: 256, 128

    adapter = HyperDimensionalAdapter(output_shapes, num_context_rows=N, key=k_params)

    outputs = adapter(context)
    outputs = jax.tree_util.tree_map(jax.block_until_ready, outputs)

    # sanity check against the jnp.fft reference (single MXU matmul; TPU may use
    # reduced-precision passes internally, so tolerance stays generous)
    refs = adapter.reference(context)
    for name in output_shapes:
        o, r = outputs[name], refs[name]
        assert o.shape == tuple(output_shapes[name])
        denom = jnp.maximum(jnp.max(jnp.abs(r)), 1.0)
        rel_err = jnp.max(jnp.abs(o - r)) / denom
        assert float(rel_err) < 2e-2, f"{name}: rel_err={float(rel_err)}"

    print("KERNEL_OK")
</pallas_src>

<mosaic_0001>
module attributes {stable_mosaic.version = 11 : i64} {
  func.func @_fused_kernel(%arg0: i32, %arg1: memref<8x16xf32, #tpu.memory_space<vmem>>, %arg2: memref<16x128xf32, #tpu.memory_space<vmem>>, %arg3: memref<8x128xf32, #tpu.memory_space<vmem>>) attributes {dimension_semantics = [#tpu.dimension_semantics<parallel>], iteration_bounds = array<i64: 1>, scalar_prefetch = 0 : i64, scratch_operands = 0 : i64, tpu.core_type = #tpu.core_type<tc>, window_params = [{pipeline_mode = #tpu.pipeline_mode<synchronous>, transform_indices = @transform_0, window_bounds = array<i64: 8, 16>}, {transform_indices = @transform_1, window_bounds = array<i64: 16, 128>}, {transform_indices = @transform_2, window_bounds = array<i64: 8, 128>}]} {
    %c0 = arith.constant 0 : index
    %c0_0 = arith.constant 0 : index
    %0 = vector.load %arg1[%c0, %c0_0] : memref<8x16xf32, #tpu.memory_space<vmem>>, vector<8x16xf32>
    %c0_1 = arith.constant 0 : index
    %c0_2 = arith.constant 0 : index
    %1 = vector.load %arg2[%c0_1, %c0_2] : memref<16x128xf32, #tpu.memory_space<vmem>>, vector<16x128xf32>
    %cst = arith.constant dense<0.000000e+00> : vector<8x128xf32>
    %2 = tpu.matmul %0, %1, %cst {dimension_numbers = #tpu.dot_dimension_numbers<[1], [0], [0], [1], [0, 0, 1, 1], [], []>} : vector<8x16xf32>, vector<16x128xf32>, vector<8x128xf32> -> vector<8x128xf32>
    %c0_3 = arith.constant 0 : index
    %c0_4 = arith.constant 0 : index
    %3 = vector.load %arg3[%c0_3, %c0_4] : memref<8x128xf32, #tpu.memory_space<vmem>>, vector<8x128xf32>
    tpu.vector_store %arg3[%c0_3, %c0_4], %2 {strides = array<i32>} : memref<8x128xf32, #tpu.memory_space<vmem>>, vector<8x128xf32>,
    return
  }
  func.func @transform_0(%arg0: i32) -> (i32, i32) {
    %c0_i32 = arith.constant 0 : i32
    %c0_i32_0 = arith.constant 0 : i32
    %c0_i32_1 = arith.constant 0 : i32
    return %c0_i32, %c0_i32_0 : i32, i32
  }
  func.func @transform_1(%arg0: i32) -> (i32, i32) {
    %c0_i32 = arith.constant 0 : i32
    %c0_i32_0 = arith.constant 0 : i32
    return %c0_i32, %arg0 : i32, i32
  }
  func.func @transform_2(%arg0: i32) -> (i32, i32) {
    %c0_i32 = arith.constant 0 : i32
    %c0_i32_0 = arith.constant 0 : i32
    return %c0_i32, %arg0 : i32, i32
  }
}

</mosaic_0001>

<llo_original>
// kernel: tpu_custom_call.1
$region0: #{tpu_custom_call.1}
  #allocation0 [shape = 'u32[]', space=smem, size = 0x4, offset = 0x4, fixed_abs, tag = 'smem constant byte address 0x4 - core index']
  #allocation1 [shape = 'u32[144,128]{1,0:T(1,128)}', space=vmem, size = 0x12000, scoped, tag = 'internal scratch']
  %s0 = inlined_call_operand.hbm [shape: f32[8,16], index: 0, kind: input, shape index: {}]
  %s1 = inlined_call_operand.hbm [shape: f32[16,128], index: 1, kind: input, shape index: {}]
  %s2 = inlined_call_operand.hbm [shape: f32[8,128], index: 2, kind: output, shape index: {}]
  %s3 = sld [smem:[#allocation0]]
  $region26: #{tpu_custom_call.1} parent=0
    _
  %s5 = ssub.s32 1, %s3
  %s6 = scalar_select 0, %s5, %s3
  $region1: #{tpu_custom_call.1} parent=0
    #allocation2 [shape = 'u8[4096]{0}', space=vmem, size = 0x1000, scoped, tag = 'input window, operand 0, single buffered']
    #allocation3 [shape = 's32[1]{0}', space=sflag, size = 0x4, scoped, tag = 'scoped memory for tpu_custom_call.1']
    #allocation4 [shape = 's32[1]{0}', space=sflag, size = 0x4, scoped, tag = 'scoped memory for tpu_custom_call.1']
    #allocation5 [shape = 'u8[8192]{0}', space=vmem, size = 0x2000, scoped, tag = 'input window, operand 1, single buffered']
    #allocation6 [shape = 's32[1]{0}', space=sflag, size = 0x4, scoped, tag = 'scoped memory for tpu_custom_call.1']
    #allocation7 [shape = 'u8[4096]{0}', space=vmem, size = 0x1000, scoped, tag = 'output window, operand 0, single buffered']
    %7 = vsyncpa [#allocation3], 0
    %8 = vsyncpa [#allocation6], 0
    %9 = vsyncpa [#allocation4], 0
    // Predicated region
    $region2: #{tpu_custom_call.1} parent=1 // pred_check
      _
    $region3: #{tpu_custom_call.1} parent=1 // pred_check_branch
      %11 = sbr.rel (0) target = $region5
    $region4: #{tpu_custom_call.1} parent=1 // pred_region
      %s13 = ssub.s32 128, 128
      %14 = vsyncadd [#allocation3], %s13
      %s16 = sshll.u32 [#allocation2], 4
      %s17 = int_to_ptr.vmem [resolvable:$true] %s16
      %19 = dma.hbm_to_vmem [thread:$0]  %s0, 128, %s17, [#allocation3]
    $region5: #{tpu_custom_call.1} parent=1 // pred_fallthru
      _
    // Predicated region
    $region6: #{tpu_custom_call.1} parent=1 // pred_check
      _
    $region7: #{tpu_custom_call.1} parent=1 // pred_check_branch
      %21 = sbr.rel (0) target = $region9
    $region8: #{tpu_custom_call.1} parent=1 // pred_region
      %s23 = ssub.s32 256, 256
      %24 = vsyncadd [#allocation6], %s23
      %s25 = sshll.u32 [#allocation5], 4
      %s26 = int_to_ptr.vmem [resolvable:$true] %s25
      %31 = dma.hbm_to_vmem [thread:$0]  %s1, 256, %s26, [#allocation6], 128, 128, 8
    $region9: #{tpu_custom_call.1} parent=1 // pred_fallthru
      _
    // Predicated region
    $region10: #{tpu_custom_call.1} parent=1 // pred_check
      _
    $region11: #{tpu_custom_call.1} parent=1 // pred_check_branch
      %33 = sbr.rel (0) target = $region13
    $region12: #{tpu_custom_call.1} parent=1 // pred_region
      %34 = dma.done [#allocation3], 128
    $region13: #{tpu_custom_call.1} parent=1 // pred_fallthru
      _
    // Predicated region
    $region14: #{tpu_custom_call.1} parent=1 // pred_check
      _
    $region15: #{tpu_custom_call.1} parent=1 // pred_check_branch
      %36 = sbr.rel (0) target = $region17
    $region16: #{tpu_custom_call.1} parent=1 // pred_region
      %37 = dma.done [#allocation6], 256
    $region17: #{tpu_custom_call.1} parent=1 // pred_fallthru
      _
    %v38 = vld [vmem:[#allocation2] sm:$0xff]
    %v39 = vld [vmem:[#allocation5] sm:$0xff]
    %v40 = vld [vmem:[#allocation5 + $0x8] sm:$0xff]
    %vm41 = vcmask 130048
    %v43 = vsel %vm41, %v38, 0
    %45 = vmatprep.subr.mxu0 0.0
    %46 = vmatpush1.msra.mxu0 %v39
    %47 = vmatprep.subr.mxu0 0.0
    %48 = vmatpush1.msra.mxu0 %v40
    %49 = vmatprep.subr.mxu0 0.0
    %50 = vmatpush1.msra.mxu0 0.0
    %51 = vmatprep.subr.mxu0 0.0
    %52 = vmatpush1.msra.mxu0 0.0
    %53 = vmatprep.subr.mxu0 0.0
    %54 = vmatpush1.msra.mxu0 0.0
    %55 = vmatprep.subr.mxu0 0.0
    %56 = vmatpush1.msra.mxu0 0.0
    %57 = vmatprep.subr.mxu0 0.0
    %58 = vmatpush1.msra.mxu0 0.0
    %59 = vmatprep.subr.mxu0 0.0
    %60 = vmatpush1.msra.mxu0 0.0
    %61 = vmatprep.subr.mxu0 0.0
    %62 = vmatpush1.msra.mxu0 0.0
    %63 = vmatprep.subr.mxu0 0.0
    %64 = vmatpush1.msra.mxu0 0.0
    %65 = vmatprep.subr.mxu0 0.0
    %66 = vmatpush1.msra.mxu0 0.0
    %67 = vmatprep.subr.mxu0 0.0
    %68 = vmatpush1.msra.mxu0 0.0
    %69 = vmatprep.subr.mxu0 0.0
    %70 = vmatpush1.msra.mxu0 0.0
    %71 = vmatprep.subr.mxu0 0.0
    %72 = vmatpush1.msra.mxu0 0.0
    %73 = vmatprep.subr.mxu0 0.0
    %74 = vmatpush1.msra.mxu0 0.0
    %75 = vmatprep.subr.mxu0 0.0
    %76 = vmatpush1.msra.mxu0 0.0
    %77 = vmatprep.subr.mxu0 0.0
    %78 = vmatpush1.msra.mxu0 0.0
    %79 = vmatprep.subr.mxu0 0.0
    %80 = vmatpush1.msra.mxu0 0.0
    %81 = vmatprep.subr.mxu0 0.0
    %82 = vmatpush1.msra.mxu0 0.0
    %83 = vmatprep.subr.mxu0 0.0
    %84 = vmatpush1.msra.mxu0 0.0
    %85 = vmatprep.subr.mxu0 0.0
    %86 = vmatpush1.msra.mxu0 0.0
    %87 = vmatprep.subr.mxu0 0.0
    %88 = vmatpush1.msra.mxu0 0.0
    %89 = vmatprep.subr.mxu0 0.0
    %90 = vmatpush1.msra.mxu0 0.0
    %91 = vmatprep.subr.mxu0 0.0
    %92 = vmatpush1.msra.mxu0 0.0
    %93 = vmatprep.subr.mxu0 0.0
    %94 = vmatpush1.msra.mxu0 0.0
    %95 = vmatprep.subr.mxu0 0.0
    %96 = vmatpush1.msra.mxu0 0.0
    %97 = vmatprep.subr.mxu0 0.0
    %98 = vmatpush1.msra.mxu0 0.0
    %99 = vmatprep.subr.mxu0 0.0
    %100 = vmatpush1.msra.mxu0 0.0
    %101 = vmatprep.subr.mxu0 0.0
    %102 = vmatpush1.msra.mxu0 0.0
    %103 = vmatprep.subr.mxu0 0.0
    %104 = vmatpush1.msra.mxu0 0.0
    %105 = vmatprep.subr.mxu0 0.0
    %106 = vmatpush1.msra.mxu0 0.0
    %107 = vmatprep.subr.mxu0 0.0
    %108 = vmatpush1.msra.mxu0 0.0
    %109 = vmatprep.mubr.f32.mxu0 0.0
    %110 = vmatmul.mubr.f32.gmra.mrb[0].mxu0 %v43
    %v111 = vpop.f32.mrb[0].mxu0
    %v112 = vadd.f32 0.0, %v111
    %v113 = vpop.f32.mrb[0].mxu0
    %114 = vdwg.mxu0
    %115 = vst [vmem:[#allocation7] sm:$0xff] %v112
    // Predicated region
    $region18: #{tpu_custom_call.1} parent=1 // pred_check
      _
    $region19: #{tpu_custom_call.1} parent=1 // pred_check_branch
      %117 = sbr.rel (0) target = $region21
    $region20: #{tpu_custom_call.1} parent=1 // pred_region
      %s119 = ssub.s32 128, 128
      %120 = vsyncadd [#allocation4], %s119
      %s122 = sshll.u32 [#allocation7], 4
      %s123 = int_to_ptr.vmem [resolvable:$true] %s122
      %125 = dma.vmem_to_hbm [thread:$0]  %s123, 128, %s2, [#allocation4]
    $region21: #{tpu_custom_call.1} parent=1 // pred_fallthru
      _
    // Predicated region
    $region22: #{tpu_custom_call.1} parent=1 // pred_check
      _
    $region23: #{tpu_custom_call.1} parent=1 // pred_check_branch
      %127 = sbr.rel (0) target = $region25
    $region24: #{tpu_custom_call.1} parent=1 // pred_region
      %128 = dma.done [#allocation4], 128
    $region25: #{tpu_custom_call.1} parent=1 // pred_fallthru
      _
    %129 = vsyncpa [#allocation3], 1
    %130 = vsyncpa [#allocation6], 1
    %131 = vsyncpa [#allocation4], 1

</llo_original>
